<compile_context>
chip_gen: v7x
topology: tpu7x:2x2x1
jax: 0.10.0
libtpu: 0.0.40
codegen_flags: <defaults>
</compile_context>

<pallas_src>
import jax
import jax.numpy as jnp
from jax.experimental import pallas as pl
from jax.experimental.pallas import tpu as pltpu


# ----------------------------- kernels --------------------------------------

def _ffn_kernel_acc_out(x_ref, w1_ref, b1_ref, w2_ref, b2_ref, o_ref):
    """fp32 output: accumulate directly into the resident output block."""
    f = pl.program_id(1)

    # Fold b2 into the accumulator init.
    @pl.when(f == 0)
    def _():
        o_ref[...] = jnp.broadcast_to(b2_ref[...], o_ref.shape)

    x = x_ref[...].astype(w1_ref.dtype)       # in-kernel cast (VPU, free under MXU)
    h = jnp.dot(x, w1_ref[...], preferred_element_type=jnp.float32)
    h = jnp.maximum(h + b1_ref[...], 0.0)
    o_ref[...] += jnp.dot(h.astype(w2_ref.dtype), w2_ref[...],
                          preferred_element_type=jnp.float32)


def _ffn_kernel_scratch(x_ref, w1_ref, b1_ref, w2_ref, b2_ref, o_ref, acc_ref):
    """Non-fp32 output: fp32 scratch accumulator, cast + store at the last f."""
    f = pl.program_id(1)

    @pl.when(f == 0)
    def _():
        acc_ref[...] = jnp.broadcast_to(b2_ref[...], acc_ref.shape)

    x = x_ref[...].astype(w1_ref.dtype)
    h = jnp.dot(x, w1_ref[...], preferred_element_type=jnp.float32)
    h = jnp.maximum(h + b1_ref[...], 0.0)
    acc_ref[...] += jnp.dot(h.astype(w2_ref.dtype), w2_ref[...],
                            preferred_element_type=jnp.float32)

    @pl.when(f == pl.num_programs(1) - 1)
    def _():
        o_ref[...] = acc_ref[...].astype(o_ref.dtype)


# ----------------------------- helpers ---------------------------------------

def _round_up(x, m):
    return ((x + m - 1) // m) * m


def _cdiv(a, b):
    return (a + b - 1) // b


def _tpu_config():
    """Per-generation tiling defaults / VMEM budget.  Conservative fallbacks."""
    kind = ""
    try:
        kind = jax.devices()[0].device_kind.lower()
    except Exception:
        pass
    vmem_cap = 128 * 1024 * 1024
    try:
        info = pltpu.get_tpu_info()
        vmem_cap = int(getattr(info, "vmem_capacity_bytes", vmem_cap))
    except Exception:
        pass

    if ("v5 lite" in kind) or ("v5e" in kind) or ("v5lite" in kind):
        # v5e: 128x128 MXU is already the bottleneck at modest tm; 128-lane tf ok.
        return dict(tile_m=512, tile_f=512, lane_mult=128,
                    vmem_limit=min(vmem_cap // 2, 48 << 20), num_tc=1)
    if ("v7" in kind) or vmem_cap <= (64 << 20):
        # v7x: 64 MiB VMEM per TC, 2 TCs/chip, effective ~1.6 TB/s HBM per TC.
        return dict(tile_m=768, tile_f=512, lane_mult=256,
                    vmem_limit=min(int(vmem_cap * 0.6), 38 << 20), num_tc=2)
    # v6e / default: 128 MiB VMEM, single TC, break-even tm ~680 -> use 1024.
    return dict(tile_m=1024, tile_f=512, lane_mult=256,
                vmem_limit=48 << 20, num_tc=1)


def _pick_tf(d_ff, tile_f, lane_mult):
    """Pick the d_ff tile; prefer an exact divisor of d_ff (no weight padding)."""
    if d_ff <= tile_f:
        return d_ff, d_ff
    start = max(lane_mult, (tile_f // lane_mult) * lane_mult)
    for cand in range(start, lane_mult - 1, -lane_mult):
        if d_ff % cand == 0:
            return cand, d_ff
    tf = start
    return tf, _round_up(d_ff, tf)


def _vmem_footprint(tm, tf, d_model, x_bytes, w_bytes, out_bytes, use_scratch):
    fp = 2 * tm * d_model * x_bytes            # X tile, double-buffered
    fp += 2 * d_model * tf * w_bytes           # W1 col slab, double-buffered
    fp += 2 * tf * d_model * w_bytes           # W2 row slab, double-buffered
    fp += 2 * tm * d_model * out_bytes         # output tile
    if use_scratch:
        fp += tm * d_model * 4                 # fp32 accumulator scratch
    fp += tm * tf * (4 + w_bytes)              # h (fp32) + its compute-dtype copy
    return fp


# ----------------------------- public API ------------------------------------

def make_feed_forward(w1, b1, w2, b2, *,
                      tile_m=None, tile_f=None, compute_dtype=jnp.bfloat16):
    """Pre-casts / pre-pads the weights ONCE and returns apply(x).

    Weights and X are fed to the MXU in `compute_dtype` (bf16 by default);
    biases and accumulation stay fp32; output keeps x.dtype.  Pass
    compute_dtype=jnp.float32 for full-precision semantics.
    """
    d_model, d_ff = w1.shape
    assert w2.shape == (d_ff, d_model)
    cfg = _tpu_config()
    if tile_m is None:
        tile_m = cfg["tile_m"]
    if tile_f is None:
        tile_f = cfg["tile_f"]

    tf, F_pad = _pick_tf(d_ff, tile_f, cfg["lane_mult"])

    # One-time weight prep (OUTSIDE the hot path: no per-call HBM pass).
    w1c = jnp.asarray(w1, compute_dtype)
    w2c = jnp.asarray(w2, compute_dtype)
    b1f = jnp.asarray(b1, jnp.float32).reshape(1, d_ff)
    b2f = jnp.asarray(b2, jnp.float32).reshape(1, d_model)
    if F_pad != d_ff:
        # Zero-padded d_ff is exact: relu(0 + 0) = 0 and zero W2 rows add nothing.
        w1c = jnp.pad(w1c, ((0, 0), (0, F_pad - d_ff)))
        b1f = jnp.pad(b1f, ((0, 0), (0, F_pad - d_ff)))
        w2c = jnp.pad(w2c, ((0, F_pad - d_ff), (0, 0)))

    w_bytes = jnp.dtype(compute_dtype).itemsize

    def apply(x):
        batch, seq, dm = x.shape
        assert dm == d_model, "d_model mismatch"
        out_dtype = x.dtype
        x_bytes = jnp.dtype(x.dtype).itemsize
        out_bytes = jnp.dtype(out_dtype).itemsize
        use_scratch = out_dtype != jnp.float32

        M = batch * seq

        # Row tile: as large as the generation wants, never above (padded) M.
        tm = _round_up(min(tile_m, _round_up(M, 8)), 8)
        # On 2-TC chips make sure both cores get at least one row tile.
        if cfg["num_tc"] >= 2 and M > 8 and _cdiv(_round_up(M, 8), tm) < cfg["num_tc"]:
            tm = _round_up(_cdiv(M, cfg["num_tc"]), 8)
        # Shrink if the VMEM footprint would blow the per-generation budget.
        budget = int(cfg["vmem_limit"] * 0.75)
        while tm > 64 and _vmem_footprint(tm, tf, d_model, x_bytes, w_bytes,
                                          out_bytes, use_scratch) > budget:
            tm = _round_up(tm // 2, 8)
        M_pad = _round_up(M, tm)

        x2d = x.reshape(M, d_model)          # native dtype; cast happens in-kernel
        if M_pad != M:
            x2d = jnp.pad(x2d, ((0, M_pad - M), (0, 0)))

        grid = (M_pad // tm, F_pad // tf)
        n_row_tiles = grid[0]

        # Weights are re-streamed once per row tile -> count them grid[0] times.
        cost = pl.CostEstimate(
            flops=4 * M_pad * d_model * F_pad,
            transcendentals=0,
            bytes_accessed=(M_pad * d_model * x_bytes
                            + n_row_tiles * 2 * d_model * F_pad * w_bytes
                            + n_row_tiles * 4 * (F_pad + d_model)
                            + M_pad * d_model * out_bytes))

        in_specs = [
            pl.BlockSpec((tm, d_model), lambda i, f: (i, 0)),   # X row tile
            pl.BlockSpec((d_model, tf), lambda i, f: (0, f)),   # W1 col slab
            pl.BlockSpec((1, tf), lambda i, f: (0, f)),         # b1 slab
            pl.BlockSpec((tf, d_model), lambda i, f: (f, 0)),   # W2 row slab
            pl.BlockSpec((1, d_model), lambda i, f: (0, 0)),    # b2
        ]
        out_spec = pl.BlockSpec((tm, d_model), lambda i, f: (i, 0))

        if use_scratch:
            kernel = _ffn_kernel_scratch
            scratch = [pltpu.VMEM((tm, d_model), jnp.float32)]
        else:
            kernel = _ffn_kernel_acc_out
            scratch = []

        out = pl.pallas_call(
            kernel,
            out_shape=jax.ShapeDtypeStruct((M_pad, d_model), out_dtype),
            grid_spec=pltpu.PrefetchScalarGridSpec(
                num_scalar_prefetch=0,
                grid=grid,
                in_specs=in_specs,
                out_specs=out_spec,
                scratch_shapes=scratch,
            ),
            compiler_params=pltpu.CompilerParams(
                dimension_semantics=("parallel", "arbitrary"),
                vmem_limit_bytes=cfg["vmem_limit"],
            ),
            cost_estimate=cost,
        )(x2d, w1c, b1f, w2c, b2f)

        if M_pad != M:
            out = out[:M]
        return out.reshape(batch, seq, d_model)

    return apply


def feed_forward_block(x, w1, b1, w2, b2, *,
                       tile_m=None, tile_f=None, compute_dtype=jnp.bfloat16):
    """One-shot convenience wrapper (re-preps the weights each call).
    For a hot path, build `apply = make_feed_forward(...)` once and reuse it."""
    return make_feed_forward(w1, b1, w2, b2, tile_m=tile_m, tile_f=tile_f,
                             compute_dtype=compute_dtype)(x)


# ----------------------------- test harness ----------------------------------

def init_params(key, d_model, d_ff, dtype=jnp.float32):
    """Deterministic init mimicking torch.nn.Linear (uniform +/- 1/sqrt(fan_in))."""
    k1, k2, k3, k4 = jax.random.split(key, 4)
    bound1 = 1.0 / (d_model ** 0.5)
    bound2 = 1.0 / (d_ff ** 0.5)
    w1 = jax.random.uniform(k1, (d_model, d_ff), dtype, -bound1, bound1)
    b1 = jax.random.uniform(k2, (d_ff,), dtype, -bound1, bound1)
    w2 = jax.random.uniform(k3, (d_ff, d_model), dtype, -bound2, bound2)
    b2 = jax.random.uniform(k4, (d_model,), dtype, -bound2, bound2)
    return w1, b1, w2, b2


def _reference(x, w1, b1, w2, b2, compute_dtype):
    xc = x.astype(compute_dtype).astype(jnp.float32)
    w1c = jnp.asarray(w1, compute_dtype).astype(jnp.float32)
    w2c = jnp.asarray(w2, compute_dtype).astype(jnp.float32)
    h = jnp.maximum(xc @ w1c + jnp.asarray(b1, jnp.float32), 0.0)
    return (h @ w2c + jnp.asarray(b2, jnp.float32)).astype(x.dtype)


def _close(a, b, atol, rtol):
    return jnp.allclose(a.astype(jnp.float32), b.astype(jnp.float32),
                        atol=atol, rtol=rtol)


if __name__ == "__main__":
    key = jax.random.PRNGKey(0)

    # --- Test 1: lane-dense shapes, fp32 and bf16 (default) compute paths ----
    batch, seq, d_model, d_ff = 2, 8, 128, 256
    kx, kp = jax.random.split(key)
    x = jax.random.normal(kx, (batch, seq, d_model), jnp.float32)
    w1, b1, w2, b2 = init_params(kp, d_model, d_ff)

    out_f32 = jax.block_until_ready(
        feed_forward_block(x, w1, b1, w2, b2, compute_dtype=jnp.float32))
    ref_f32 = _reference(x, w1, b1, w2, b2, jnp.float32)
    assert out_f32.shape == (batch, seq, d_model)
    assert _close(out_f32, ref_f32, 1e-4, 1e-4), "fp32 mismatch"

    out_bf16 = jax.block_until_ready(feed_forward_block(x, w1, b1, w2, b2))
    ref_bf16 = _reference(x, w1, b1, w2, b2, jnp.bfloat16)
    assert _close(out_bf16, ref_bf16, 1e-2, 1e-2), "bf16-compute mismatch"

    # --- Test 2: ragged M (padding path) + multi-step d_ff accumulation ------
    batch2, seq2, d_model2, d_ff2 = 3, 5, 128, 384
    kx2, kp2 = jax.random.split(jax.random.PRNGKey(1))
    x2 = jax.random.normal(kx2, (batch2, seq2, d_model2), jnp.float32)
    w1b, b1b, w2b, b2b = init_params(kp2, d_model2, d_ff2)

    out2 = jax.block_until_ready(
        feed_forward_block(x2, w1b, b1b, w2b, b2b,
                           tile_f=128, compute_dtype=jnp.float32))
    ref2 = _reference(x2, w1b, b1b, w2b, b2b, jnp.float32)
    assert out2.shape == (batch2, seq2, d_model2)
    assert _close(out2, ref2, 1e-4, 1e-4), "ragged fp32 mismatch"

    # --- Test 3: bf16 input/output (scratch-accumulator kernel variant) ------
    x_bf = x.astype(jnp.bfloat16)
    out3 = jax.block_until_ready(feed_forward_block(x_bf, w1, b1, w2, b2))
    ref3 = _reference(x_bf, w1, b1, w2, b2, jnp.bfloat16)
    assert out3.dtype == jnp.bfloat16
    assert _close(out3, ref3, 2e-2, 2e-2), "bf16 in/out mismatch"

    # --- Test 4: prepared-weights hot path (weights cast/padded once) --------
    ffn = make_feed_forward(w1, b1, w2, b2)          # prep happens here, once
    out4 = jax.block_until_ready(jax.jit(ffn)(x))
    assert _close(out4, out_bf16, 1e-6, 1e-6), "prepared-path mismatch"

    print("KERNEL_OK")
</pallas_src>

<mosaic_0001>
module attributes {stable_mosaic.version = 11 : i64} {
  func.func @_ffn_kernel_acc_out(%arg0: i32, %arg1: i32, %arg2: memref<16x128xf32, #tpu.memory_space<vmem>>, %arg3: memref<128x256xf32, #tpu.memory_space<vmem>>, %arg4: memref<1x256xf32, #tpu.memory_space<vmem>>, %arg5: memref<256x128xf32, #tpu.memory_space<vmem>>, %arg6: memref<1x128xf32, #tpu.memory_space<vmem>>, %arg7: memref<16x128xf32, #tpu.memory_space<vmem>>) attributes {dimension_semantics = [#tpu.dimension_semantics<parallel>, #tpu.dimension_semantics<arbitrary>], iteration_bounds = array<i64: 1, 1>, scalar_prefetch = 0 : i64, scratch_operands = 0 : i64, tpu.core_type = #tpu.core_type<tc>, window_params = [{transform_indices = @transform_0, window_bounds = array<i64: 16, 128>}, {transform_indices = @transform_1, window_bounds = array<i64: 128, 256>}, {transform_indices = @transform_2, window_bounds = array<i64: 1, 256>}, {transform_indices = @transform_3, window_bounds = array<i64: 256, 128>}, {pipeline_mode = #tpu.pipeline_mode<synchronous>, transform_indices = @transform_4, window_bounds = array<i64: 1, 128>}, {transform_indices = @transform_5, window_bounds = array<i64: 16, 128>}]} {
    %c0_i32 = arith.constant 0 : i32
    %0 = arith.cmpi eq, %arg1, %c0_i32 : i32
    %1 = arith.extui %0 : i1 to i32
    %c0_i32_0 = arith.constant 0 : i32
    %2 = arith.cmpi ne, %1, %c0_i32_0 : i32
    scf.if %2 {
      %c0_14 = arith.constant 0 : index
      %c0_15 = arith.constant 0 : index
      %16 = vector.load %arg6[%c0_14, %c0_15] : memref<1x128xf32, #tpu.memory_space<vmem>>, vector<1x128xf32>
      %17 = vector.shape_cast %16 : vector<1x128xf32> to vector<1x128xf32>
      %18 = vector.broadcast %17 : vector<1x128xf32> to vector<16x128xf32>
      %c0_16 = arith.constant 0 : index
      %c0_17 = arith.constant 0 : index
      %19 = vector.load %arg7[%c0_16, %c0_17] : memref<16x128xf32, #tpu.memory_space<vmem>>, vector<16x128xf32>
      tpu.vector_store %arg7[%c0_16, %c0_17], %18 {strides = array<i32>} : memref<16x128xf32, #tpu.memory_space<vmem>>, vector<16x128xf32>,
    } else {
    }
    %c0 = arith.constant 0 : index
    %c0_1 = arith.constant 0 : index
    %3 = vector.load %arg2[%c0, %c0_1] : memref<16x128xf32, #tpu.memory_space<vmem>>, vector<16x128xf32>
    %c0_2 = arith.constant 0 : index
    %c0_3 = arith.constant 0 : index
    %4 = vector.load %arg3[%c0_2, %c0_3] : memref<128x256xf32, #tpu.memory_space<vmem>>, vector<128x256xf32>
    %cst = arith.constant dense<0.000000e+00> : vector<16x256xf32>
    %5 = tpu.matmul %3, %4, %cst {dimension_numbers = #tpu.dot_dimension_numbers<[1], [0], [0], [1], [0, 0, 1, 1], [], []>} : vector<16x128xf32>, vector<128x256xf32>, vector<16x256xf32> -> vector<16x256xf32>
    %c0_4 = arith.constant 0 : index
    %c0_5 = arith.constant 0 : index
    %6 = vector.load %arg4[%c0_4, %c0_5] : memref<1x256xf32, #tpu.memory_space<vmem>>, vector<1x256xf32>
    %7 = vector.broadcast %6 : vector<1x256xf32> to vector<16x256xf32>
    %8 = arith.addf %5, %7 : vector<16x256xf32>
    %cst_6 = arith.constant 0.000000e+00 : f32
    %9 = vector.broadcast %cst_6 : f32 to vector<16x256xf32>
    %10 = arith.maximumf %8, %9 : vector<16x256xf32>
    %c0_7 = arith.constant 0 : index
    %c0_8 = arith.constant 0 : index
    %11 = vector.load %arg7[%c0_7, %c0_8] : memref<16x128xf32, #tpu.memory_space<vmem>>, vector<16x128xf32>
    %c0_9 = arith.constant 0 : index
    %c0_10 = arith.constant 0 : index
    %12 = vector.load %arg5[%c0_9, %c0_10] : memref<256x128xf32, #tpu.memory_space<vmem>>, vector<256x128xf32>
    %cst_11 = arith.constant dense<0.000000e+00> : vector<16x128xf32>
    %13 = tpu.matmul %10, %12, %cst_11 {dimension_numbers = #tpu.dot_dimension_numbers<[1], [0], [0], [1], [0, 0, 1, 1], [], []>} : vector<16x256xf32>, vector<256x128xf32>, vector<16x128xf32> -> vector<16x128xf32>
    %14 = arith.addf %11, %13 : vector<16x128xf32>
    %c0_12 = arith.constant 0 : index
    %c0_13 = arith.constant 0 : index
    %15 = vector.load %arg7[%c0_12, %c0_13] : memref<16x128xf32, #tpu.memory_space<vmem>>, vector<16x128xf32>
    tpu.vector_store %arg7[%c0_12, %c0_13], %14 {strides = array<i32>} : memref<16x128xf32, #tpu.memory_space<vmem>>, vector<16x128xf32>,
    return
  }
  func.func @transform_0(%arg0: i32, %arg1: i32) -> (i32, i32) {
    %c0_i32 = arith.constant 0 : i32
    %c0_i32_0 = arith.constant 0 : i32
    return %arg0, %c0_i32 : i32, i32
  }
  func.func @transform_1(%arg0: i32, %arg1: i32) -> (i32, i32) {
    %c0_i32 = arith.constant 0 : i32
    %c0_i32_0 = arith.constant 0 : i32
    return %c0_i32, %arg1 : i32, i32
  }
  func.func @transform_2(%arg0: i32, %arg1: i32) -> (i32, i32) {
    %c0_i32 = arith.constant 0 : i32
    %c0_i32_0 = arith.constant 0 : i32
    return %c0_i32, %arg1 : i32, i32
  }
  func.func @transform_3(%arg0: i32, %arg1: i32) -> (i32, i32) {
    %c0_i32 = arith.constant 0 : i32
    %c0_i32_0 = arith.constant 0 : i32
    return %arg1, %c0_i32 : i32, i32
  }
  func.func @transform_4(%arg0: i32, %arg1: i32) -> (i32, i32) {
    %c0_i32 = arith.constant 0 : i32
    %c0_i32_0 = arith.constant 0 : i32
    %c0_i32_1 = arith.constant 0 : i32
    return %c0_i32, %c0_i32_0 : i32, i32
  }
  func.func @transform_5(%arg0: i32, %arg1: i32) -> (i32, i32) {
    %c0_i32 = arith.constant 0 : i32
    %c0_i32_0 = arith.constant 0 : i32
    return %arg0, %c0_i32 : i32, i32
  }
}

</mosaic_0001>

<llo_original>
// kernel: tpu_custom_call.1
$region0: #{tpu_custom_call.1}
  #allocation0 [shape = 'u32[]', space=smem, size = 0x4, offset = 0x4, fixed_abs, tag = 'smem constant byte address 0x4 - core index']
  #allocation1 [shape = 'u32[144,128]{1,0:T(1,128)}', space=vmem, size = 0x12000, scoped, tag = 'internal scratch']
  %s0 = inlined_call_operand.hbm [shape: f32[16,128], index: 0, kind: input, shape index: {}]
  %s1 = inlined_call_operand.hbm [shape: f32[128,256], index: 1, kind: input, shape index: {}]
  %s2 = inlined_call_operand.vmem [shape: f32[1,256], index: 2, kind: input, shape index: {}]
  %s3 = inlined_call_operand.hbm [shape: f32[256,128], index: 3, kind: input, shape index: {}]
  %s4 = inlined_call_operand.vmem [shape: f32[1,128], index: 4, kind: input, shape index: {}]
  %s5 = inlined_call_operand.hbm [shape: f32[16,128], index: 5, kind: output, shape index: {}]
  %s6 = sld [smem:[#allocation0]]
  $region46: #{tpu_custom_call.1} parent=0
    _
  %s8 = ssub.s32 1, %s6
  %s9 = scalar_select 0, %s8, %s6
  $region1: #{tpu_custom_call.1} parent=0
    #allocation2 [shape = 'u8[8192]{0}', space=vmem, size = 0x2000, scoped, tag = 'input window, operand 0, single buffered']
    #allocation3 [shape = 's32[1]{0}', space=sflag, size = 0x4, scoped, tag = 'scoped memory for tpu_custom_call.1']
    #allocation4 [shape = 's32[1]{0}', space=sflag, size = 0x4, scoped, tag = 'scoped memory for tpu_custom_call.1']
    #allocation5 [shape = 'u8[131072]{0}', space=vmem, size = 0x20000, scoped, tag = 'input window, operand 1, single buffered']
    #allocation6 [shape = 's32[1]{0}', space=sflag, size = 0x4, scoped, tag = 'scoped memory for tpu_custom_call.1']
    #allocation7 [shape = 'u8[131072]{0}', space=vmem, size = 0x20000, scoped, tag = 'input window, operand 3, single buffered']
    #allocation8 [shape = 'u8[8192]{0}', space=vmem, size = 0x2000, scoped, tag = 'output window, operand 0, single buffered']
    %10 = vsyncpa [#allocation3], 0
    %11 = vsyncpa [#allocation6], 0
    %12 = vsyncpa [#allocation4], 0
    // Predicated region
    $region2: #{tpu_custom_call.1} parent=1 // pred_check
      _
    $region3: #{tpu_custom_call.1} parent=1 // pred_check_branch
      %14 = sbr.rel (0) target = $region5
    $region4: #{tpu_custom_call.1} parent=1 // pred_region
      %s16 = ssub.s32 256, 256
      %17 = vsyncadd [#allocation3], %s16
      %s18 = sshll.u32 [#allocation2], 4
      %s19 = int_to_ptr.vmem [resolvable:$true] %s18
      %24 = dma.hbm_to_vmem [thread:$0]  %s0, 256, %s19, [#allocation3], 128, 128, 8
    $region5: #{tpu_custom_call.1} parent=1 // pred_fallthru
      _
    // Predicated region
    $region6: #{tpu_custom_call.1} parent=1 // pred_check
      _
    $region7: #{tpu_custom_call.1} parent=1 // pred_check_branch
      %26 = sbr.rel (0) target = $region9
    $region8: #{tpu_custom_call.1} parent=1 // pred_region
      %s28 = ssub.s32 4096, 4096
      %29 = vsyncadd [#allocation6], %s28
      %s30 = sshll.u32 [#allocation5], 4
      %s31 = int_to_ptr.vmem [resolvable:$true] %s30
      %36 = dma.hbm_to_vmem [thread:$0]  %s1, 4096, %s31, [#allocation6], 256, 256, 16
    $region9: #{tpu_custom_call.1} parent=1 // pred_fallthru
      _
    // Predicated region
    $region10: #{tpu_custom_call.1} parent=1 // pred_check
      _
    $region11: #{tpu_custom_call.1} parent=1 // pred_check_branch
      %38 = sbr.rel (0) target = $region13
    $region12: #{tpu_custom_call.1} parent=1 // pred_region
      _
    $region13: #{tpu_custom_call.1} parent=1 // pred_fallthru
      _
    // Predicated region
    $region14: #{tpu_custom_call.1} parent=1 // pred_check
      _
    $region15: #{tpu_custom_call.1} parent=1 // pred_check_branch
      %40 = sbr.rel (0) target = $region17
    $region16: #{tpu_custom_call.1} parent=1 // pred_region
      %s42 = ssub.s32 4096, 4096
      %43 = vsyncadd [#allocation6], %s42
      %s44 = sshll.u32 [#allocation7], 4
      %s45 = int_to_ptr.vmem [resolvable:$true] %s44
      %50 = dma.hbm_to_vmem [thread:$0]  %s3, 4096, %s45, [#allocation6], 128, 128, 8
    $region17: #{tpu_custom_call.1} parent=1 // pred_fallthru
      _
    // Predicated region
    $region18: #{tpu_custom_call.1} parent=1 // pred_check
      _
    $region19: #{tpu_custom_call.1} parent=1 // pred_check_branch
      %52 = sbr.rel (0) target = $region21
    $region20: #{tpu_custom_call.1} parent=1 // pred_region
      _
    $region21: #{tpu_custom_call.1} parent=1 // pred_fallthru
      _
    // Predicated region
    $region22: #{tpu_custom_call.1} parent=1 // pred_check
      _
    $region23: #{tpu_custom_call.1} parent=1 // pred_check_branch
      %54 = sbr.rel (0) target = $region25
    $region24: #{tpu_custom_call.1} parent=1 // pred_region
      %55 = dma.done [#allocation3], 256
    $region25: #{tpu_custom_call.1} parent=1 // pred_fallthru
      _
    // Predicated region
    $region26: #{tpu_custom_call.1} parent=1 // pred_check
      _
    $region27: #{tpu_custom_call.1} parent=1 // pred_check_branch
      %57 = sbr.rel (0) target = $region29
    $region28: #{tpu_custom_call.1} parent=1 // pred_region
      %58 = dma.done [#allocation6], 4096
    $region29: #{tpu_custom_call.1} parent=1 // pred_fallthru
      _
    // Predicated region
    $region30: #{tpu_custom_call.1} parent=1 // pred_check
      _
    $region31: #{tpu_custom_call.1} parent=1 // pred_check_branch
      %60 = sbr.rel (0) target = $region33
    $region32: #{tpu_custom_call.1} parent=1 // pred_region
      %61 = dma.done [#allocation6], 4096
    $region33: #{tpu_custom_call.1} parent=1 // pred_fallthru
      _
    %p62 = scmp.eq.s32.totalorder 0, 0
    // Predicated region
    $region34: #{tpu_custom_call.1} parent=1 // pred_check
      %p63 = pneg %p62
    $region35: #{tpu_custom_call.1} parent=1 // pred_check_branch
      %65 = sbr.rel (%p63) target = $region37
    $region36: #{tpu_custom_call.1} parent=1 // pred_region
      %v66 = vld [vmem:[%s4] sm:$0x1]
      %v68 = vlaneseq
      %v69 = vshrl.u32 %v68, 7
      %v70 = vsub.s32 0, %v69
      %v71 = vrot.slane %v66, %v70
      %73 = vst [vmem:[#allocation8] sm:$0xff] %v71
      %74 = vst [vmem:[#allocation8 + $0x8] sm:$0xff] %v71
    $region37: #{tpu_custom_call.1} parent=1 // pred_fallthru
      _
    %v75 = vld [vmem:[#allocation2] sm:$0xff]
    %v76 = vld [vmem:[#allocation2 + $0x8] sm:$0xff]
    %v77 = vld [vmem:[#allocation5] sm:$0xff]
    %v78 = vld [vmem:[#allocation5 + $0x8] sm:$0xff]
    %v79 = vld [vmem:[#allocation5 + $0x10] sm:$0xff]
    %v80 = vld [vmem:[#allocation5 + $0x18] sm:$0xff]
    %v81 = vld [vmem:[#allocation5 + $0x20] sm:$0xff]
    %v82 = vld [vmem:[#allocation5 + $0x28] sm:$0xff]
    %v83 = vld [vmem:[#allocation5 + $0x30] sm:$0xff]
    %v84 = vld [vmem:[#allocation5 + $0x38] sm:$0xff]
    %v85 = vld [vmem:[#allocation5 + $0x40] sm:$0xff]
    %v86 = vld [vmem:[#allocation5 + $0x48] sm:$0xff]
    %v87 = vld [vmem:[#allocation5 + $0x50] sm:$0xff]
    %v88 = vld [vmem:[#allocation5 + $0x58] sm:$0xff]
    %v89 = vld [vmem:[#allocation5 + $0x60] sm:$0xff]
    %v90 = vld [vmem:[#allocation5 + $0x68] sm:$0xff]
    %v91 = vld [vmem:[#allocation5 + $0x70] sm:$0xff]
    %v92 = vld [vmem:[#allocation5 + $0x78] sm:$0xff]
    %v93 = vld [vmem:[#allocation5 + $0x80] sm:$0xff]
    %v94 = vld [vmem:[#allocation5 + $0x88] sm:$0xff]
    %v95 = vld [vmem:[#allocation5 + $0x90] sm:$0xff]
    %v96 = vld [vmem:[#allocation5 + $0x98] sm:$0xff]
    %v97 = vld [vmem:[#allocation5 + $0xa0] sm:$0xff]
    %v98 = vld [vmem:[#allocation5 + $0xa8] sm:$0xff]
    %v99 = vld [vmem:[#allocation5 + $0xb0] sm:$0xff]
    %v100 = vld [vmem:[#allocation5 + $0xb8] sm:$0xff]
    %v101 = vld [vmem:[#allocation5 + $0xc0] sm:$0xff]
    %v102 = vld [vmem:[#allocation5 + $0xc8] sm:$0xff]
    %v103 = vld [vmem:[#allocation5 + $0xd0] sm:$0xff]
    %v104 = vld [vmem:[#allocation5 + $0xd8] sm:$0xff]
    %v105 = vld [vmem:[#allocation5 + $0xe0] sm:$0xff]
    %v106 = vld [vmem:[#allocation5 + $0xe8] sm:$0xff]
    %v107 = vld [vmem:[#allocation5 + $0xf0] sm:$0xff]
    %v108 = vld [vmem:[#allocation5 + $0xf8] sm:$0xff]
    %v109 = vld [vmem:[%s2] sm:$0x3]
    %v111 = vlaneseq
    %v112 = vshrl.u32 %v111, 7
    %v113 = vsub.s32 0, %v112
    %v114 = vrot.slane %v109, %v113
    %v115 = vlaneseq
    %v116 = vshrl.u32 %v115, 7
    %v117 = vsub.s32 1, %v116
    %v118 = vrot.slane %v109, %v117
    %121 = vmatprep.subr.mxu0 %v78
    %122 = vmatpush1.msra.mxu0 %v77
    %123 = vmatprep.subr.mxu0 %v80
    %124 = vmatpush1.msra.mxu0 %v79
    %125 = vmatprep.subr.mxu0 %v82
    %126 = vmatpush1.msra.mxu0 %v81
    %127 = vmatprep.subr.mxu0 %v84
    %128 = vmatpush1.msra.mxu0 %v83
    %129 = vmatprep.subr.mxu0 %v86
    %130 = vmatpush1.msra.mxu0 %v85
    %131 = vmatprep.subr.mxu0 %v88
    %132 = vmatpush1.msra.mxu0 %v87
    %133 = vmatprep.subr.mxu0 %v90
    %134 = vmatpush1.msra.mxu0 %v89
    %135 = vmatprep.subr.mxu0 %v92
    %136 = vmatpush1.msra.mxu0 %v91
    %137 = vmatprep.subr.mxu0 %v94
    %138 = vmatpush1.msra.mxu0 %v93
    %139 = vmatprep.subr.mxu0 %v96
    %140 = vmatpush1.msra.mxu0 %v95
    %141 = vmatprep.subr.mxu0 %v98
    %142 = vmatpush1.msra.mxu0 %v97
    %143 = vmatprep.subr.mxu0 %v100
    %144 = vmatpush1.msra.mxu0 %v99
    %145 = vmatprep.subr.mxu0 %v102
    %146 = vmatpush1.msra.mxu0 %v101
    %147 = vmatprep.subr.mxu0 %v104
    %148 = vmatpush1.msra.mxu0 %v103
    %149 = vmatprep.subr.mxu0 %v106
    %150 = vmatpush1.msra.mxu0 %v105
    %151 = vmatprep.subr.mxu0 %v108
    %152 = vmatpush1.msra.mxu0 %v107
    %153 = vmatprep.subr.mxu0 0.0
    %154 = vmatpush1.msra.mxu0 0.0
    %155 = vmatprep.subr.mxu0 0.0
    %156 = vmatpush1.msra.mxu0 0.0
    %157 = vmatprep.subr.mxu0 0.0
    %158 = vmatpush1.msra.mxu0 0.0
    %159 = vmatprep.subr.mxu0 0.0
    %160 = vmatpush1.msra.mxu0 0.0
    %161 = vmatprep.subr.mxu0 0.0
    %162 = vmatpush1.msra.mxu0 0.0
    %163 = vmatprep.subr.mxu0 0.0
    %164 = vmatpush1.msra.mxu0 0.0
    %165 = vmatprep.subr.mxu0 0.0
    %166 = vmatpush1.msra.mxu0 0.0
    %167 = vmatprep.subr.mxu0 0.0
    %168 = vmatpush1.msra.mxu0 0.0
    %169 = vmatprep.subr.mxu0 0.0
    %170 = vmatpush1.msra.mxu0 0.0
    %171 = vmatprep.subr.mxu0 0.0
    %172 = vmatpush1.msra.mxu0 0.0
    %173 = vmatprep.subr.mxu0 0.0
    %174 = vmatpush1.msra.mxu0 0.0
    %175 = vmatprep.subr.mxu0 0.0
    %176 = vmatpush1.msra.mxu0 0.0
    %177 = vmatprep.subr.mxu0 0.0
    %178 = vmatpush1.msra.mxu0 0.0
    %179 = vmatprep.subr.mxu0 0.0
    %180 = vmatpush1.msra.mxu0 0.0
    %181 = vmatprep.subr.mxu0 0.0
    %182 = vmatpush1.msra.mxu0 0.0
    %183 = vmatprep.subr.mxu0 0.0
    %184 = vmatpush1.msra.mxu0 0.0
    %185 = vmatprep.mubr.f32.mxu0 0.0
    %186 = vmatmul.mubr.f32.gmra.mrb[0].mxu0 %v75
    %v187 = vpop.f32.mrb[0].mxu0
    %v188 = vadd.f32 %v114, %v187
    %v189 = vpop.f32.mrb[0].mxu0
    %v190 = vadd.f32 %v118, %v189
    %191 = vmatprep.mubr.f32.mxu0 0.0
    %192 = vmatmul.mubr.f32.gmra.mrb[0].mxu0 %v76
    %v193 = vpop.f32.mrb[0].mxu0
    %v194 = vadd.f32 %v114, %v193
    %v195 = vpop.f32.mrb[0].mxu0
    %v196 = vadd.f32 %v118, %v195
    %197 = vdwg.mxu0
    %v198 = vmax.f32 %v188, 0.0
    %v199 = vmax.f32 %v190, 0.0
    %v200 = vmax.f32 %v194, 0.0
    %v201 = vmax.f32 %v196, 0.0
    %v202 = vld [vmem:[#allocation8] sm:$0xff]
    %v203 = vld [vmem:[#allocation8 + $0x8] sm:$0xff]
    %v204 = vld [vmem:[#allocation7] sm:$0xff]
    %v205 = vld [vmem:[#allocation7 + $0x8] sm:$0xff]
    %v206 = vld [vmem:[#allocation7 + $0x10] sm:$0xff]
    %v207 = vld [vmem:[#allocation7 + $0x18] sm:$0xff]
    %v208 = vld [vmem:[#allocation7 + $0x20] sm:$0xff]
    %v209 = vld [vmem:[#allocation7 + $0x28] sm:$0xff]
    %v210 = vld [vmem:[#allocation7 + $0x30] sm:$0xff]
    %v211 = vld [vmem:[#allocation7 + $0x38] sm:$0xff]
    %v212 = vld [vmem:[#allocation7 + $0x40] sm:$0xff]
    %v213 = vld [vmem:[#allocation7 + $0x48] sm:$0xff]
    %v214 = vld [vmem:[#allocation7 + $0x50] sm:$0xff]
    %v215 = vld [vmem:[#allocation7 + $0x58] sm:$0xff]
    %v216 = vld [vmem:[#allocation7 + $0x60] sm:$0xff]
    %v217 = vld [vmem:[#allocation7 + $0x68] sm:$0xff]
    %v218 = vld [vmem:[#allocation7 + $0x70] sm:$0xff]
    %v219 = vld [vmem:[#allocation7 + $0x78] sm:$0xff]
    %v220 = vld [vmem:[#allocation7 + $0x80] sm:$0xff]
    %v221 = vld [vmem:[#allocation7 + $0x88] sm:$0xff]
    %v222 = vld [vmem:[#allocation7 + $0x90] sm:$0xff]
    %v223 = vld [vmem:[#allocation7 + $0x98] sm:$0xff]
    %v224 = vld [vmem:[#allocation7 + $0xa0] sm:$0xff]
    %v225 = vld [vmem:[#allocation7 + $0xa8] sm:$0xff]
    %v226 = vld [vmem:[#allocation7 + $0xb0] sm:$0xff]
    %v227 = vld [vmem:[#allocation7 + $0xb8] sm:$0xff]
    %v228 = vld [vmem:[#allocation7 + $0xc0] sm:$0xff]
    %v229 = vld [vmem:[#allocation7 + $0xc8] sm:$0xff]
    %v230 = vld [vmem:[#allocation7 + $0xd0] sm:$0xff]
    %v231 = vld [vmem:[#allocation7 + $0xd8] sm:$0xff]
    %v232 = vld [vmem:[#allocation7 + $0xe0] sm:$0xff]
    %v233 = vld [vmem:[#allocation7 + $0xe8] sm:$0xff]
    %v234 = vld [vmem:[#allocation7 + $0xf0] sm:$0xff]
    %v235 = vld [vmem:[#allocation7 + $0xf8] sm:$0xff]
    %236 = vmatprep.subr.mxu0 0.0
    %237 = vmatpush1.msra.mxu0 %v204
    %238 = vmatprep.subr.mxu0 0.0
    %239 = vmatpush1.msra.mxu0 %v205
    %240 = vmatprep.subr.mxu0 0.0
    %241 = vmatpush1.msra.mxu0 %v206
    %242 = vmatprep.subr.mxu0 0.0
    %243 = vmatpush1.msra.mxu0 %v207
    %244 = vmatprep.subr.mxu0 0.0
    %245 = vmatpush1.msra.mxu0 %v208
    %246 = vmatprep.subr.mxu0 0.0
    %247 = vmatpush1.msra.mxu0 %v209
    %248 = vmatprep.subr.mxu0 0.0
    %249 = vmatpush1.msra.mxu0 %v210
    %250 = vmatprep.subr.mxu0 0.0
    %251 = vmatpush1.msra.mxu0 %v211
    %252 = vmatprep.subr.mxu0 0.0
    %253 = vmatpush1.msra.mxu0 %v212
    %254 = vmatprep.subr.mxu0 0.0
    %255 = vmatpush1.msra.mxu0 %v213
    %256 = vmatprep.subr.mxu0 0.0
    %257 = vmatpush1.msra.mxu0 %v214
    %258 = vmatprep.subr.mxu0 0.0
    %259 = vmatpush1.msra.mxu0 %v215
    %260 = vmatprep.subr.mxu0 0.0
    %261 = vmatpush1.msra.mxu0 %v216
    %262 = vmatprep.subr.mxu0 0.0
    %263 = vmatpush1.msra.mxu0 %v217
    %264 = vmatprep.subr.mxu0 0.0
    %265 = vmatpush1.msra.mxu0 %v218
    %266 = vmatprep.subr.mxu0 0.0
    %267 = vmatpush1.msra.mxu0 %v219
    %268 = vmatprep.subr.mxu0 0.0
    %269 = vmatpush1.msra.mxu0 %v220
    %270 = vmatprep.subr.mxu0 0.0
    %271 = vmatpush1.msra.mxu0 %v221
    %272 = vmatprep.subr.mxu0 0.0
    %273 = vmatpush1.msra.mxu0 %v222
    %274 = vmatprep.subr.mxu0 0.0
    %275 = vmatpush1.msra.mxu0 %v223
    %276 = vmatprep.subr.mxu0 0.0
    %277 = vmatpush1.msra.mxu0 %v224
    %278 = vmatprep.subr.mxu0 0.0
    %279 = vmatpush1.msra.mxu0 %v225
    %280 = vmatprep.subr.mxu0 0.0
    %281 = vmatpush1.msra.mxu0 %v226
    %282 = vmatprep.subr.mxu0 0.0
    %283 = vmatpush1.msra.mxu0 %v227
    %284 = vmatprep.subr.mxu0 0.0
    %285 = vmatpush1.msra.mxu0 %v228
    %286 = vmatprep.subr.mxu0 0.0
    %287 = vmatpush1.msra.mxu0 %v229
    %288 = vmatprep.subr.mxu0 0.0
    %289 = vmatpush1.msra.mxu0 %v230
    %290 = vmatprep.subr.mxu0 0.0
    %291 = vmatpush1.msra.mxu0 %v231
    %292 = vmatprep.subr.mxu0 0.0
    %293 = vmatpush1.msra.mxu0 %v232
    %294 = vmatprep.subr.mxu0 0.0
    %295 = vmatpush1.msra.mxu0 %v233
    %296 = vmatprep.subr.mxu0 0.0
    %297 = vmatpush1.msra.mxu0 %v234
    %298 = vmatprep.subr.mxu0 0.0
    %299 = vmatpush1.msra.mxu0 %v235
    %300 = vmatprep.mubr.f32.mxu0 %v199
    %301 = vmatmul.mubr.f32.gmra.mrb[0].mxu0 %v198
    %v302 = vpop.f32.mrb[0].mxu0
    %v303 = vadd.f32 0.0, %v302
    %v304 = vpop.f32.mrb[0].mxu0
    %305 = vmatprep.mubr.f32.mxu0 %v201
    %306 = vmatmul.mubr.f32.gmra.mrb[0].mxu0 %v200
    %v307 = vpop.f32.mrb[0].mxu0
    %v308 = vadd.f32 0.0, %v307
    %v309 = vpop.f32.mrb[0].mxu0
    %310 = vdwg.mxu0
    %v311 = vadd.f32 %v202, %v303
    %v312 = vadd.f32 %v203, %v308
    %313 = vst [vmem:[#allocation8] sm:$0xff] %v311
    %314 = vst [vmem:[#allocation8 + $0x8] sm:$0xff] %v312
    // Predicated region
    $region38: #{tpu_custom_call.1} parent=1 // pred_check
      _
    $region39: #{tpu_custom_call.1} parent=1 // pred_check_branch
      %316 = sbr.rel (0) target = $region41
    $region40: #{tpu_custom_call.1} parent=1 // pred_region
      %s318 = ssub.s32 256, 256
      %319 = vsyncadd [#allocation4], %s318
      %s320 = sshll.u32 [#allocation8], 4
      %s321 = int_to_ptr.vmem [resolvable:$true] %s320
      %326 = dma.vmem_to_hbm [thread:$0]  %s321, 256, %s5, [#allocation4], 128, 128, 8
    $region41: #{tpu_custom_call.1} parent=1 // pred_fallthru
      _
    // Predicated region
    $region42: #{tpu_custom_call.1} parent=1 // pred_check
      _
    $region43: #{tpu_custom_call.1} parent=1 // pred_check_branch
      %328 = sbr.rel (0) target = $region45
    $region44: #{tpu_custom_call.1} parent=1 // pred_region
      %329 = dma.done [#allocation4], 256
    $region45: #{tpu_custom_call.1} parent=1 // pred_fallthru
      _
    %330 = vsyncpa [#allocation3], 1
    %331 = vsyncpa [#allocation6], 1
    %332 = vsyncpa [#allocation4], 1

</llo_original>
